<compile_context>
chip_gen: v7x
topology: tpu7x:2x2x1
jax: 0.10.0
libtpu: 0.0.40
codegen_flags: <defaults>
</compile_context>

<pallas_src>
import jax
import jax.numpy as jnp
from jax import lax
from jax.experimental import pallas as pl
from jax.experimental.pallas import tpu as pltpu


# ----------------------------- kernels --------------------------------------

def _res_dense_kernel_fullk(x_ref, w_ref, xres_ref, b_ref, o_ref):
    """Single-shot kernel: K is not tiled (tk == D). No accumulator scratch."""
    y = lax.dot_general(
        x_ref[...], w_ref[...],
        dimension_numbers=(((1,), (0,)), ((), ())),
        preferred_element_type=jnp.float32)
    y = y + xres_ref[...].astype(jnp.float32) + b_ref[...].astype(jnp.float32)
    o_ref[...] = jnp.maximum(y, 0.0).astype(o_ref.dtype)


def _res_dense_kernel_ktiled(x_ref, w_ref, xres_ref, b_ref, o_ref, acc_ref):
    """K-tiled kernel: f32 accumulator resident across k, residual+bias folded
    into the k==0 init, ReLU + cast-once store at the last k step."""
    k = pl.program_id(2)

    @pl.when(k == 0)
    def _():
        acc_ref[...] = (xres_ref[...].astype(jnp.float32)
                        + b_ref[...].astype(jnp.float32))

    acc_ref[...] += lax.dot_general(
        x_ref[...], w_ref[...],
        dimension_numbers=(((1,), (0,)), ((), ())),
        preferred_element_type=jnp.float32)

    @pl.when(k == pl.num_programs(2) - 1)
    def _():
        o_ref[...] = jnp.maximum(acc_ref[...], 0.0).astype(o_ref.dtype)


# ------------------------- tile / VMEM helpers -------------------------------

def _sublane_align(dtype):
    return {4: 8, 2: 16, 1: 32}.get(jnp.dtype(dtype).itemsize, 8)


def _pick_tile(dim, target, align):
    """Largest divisor of `dim` <= target that is a multiple of `align`;
    falls back to the full dim (a full-extent block is always legal)."""
    if dim <= target:
        return dim
    t = (target // align) * align
    while t >= align:
        if dim % t == 0:
            return t
        t -= align
    return dim


def _lane_divisors(D):
    """Divisors of D that are multiples of 128 (plus D itself), descending."""
    cands = set()
    k = 128
    while k <= D:
        if D % k == 0:
            cands.add(k)
        k += 128
    cands.add(D)
    return sorted(cands, reverse=True)


def _vmem_bytes(tm, tn, tk, D, x_it, w_it, o_it):
    lhs  = 2 * tm * tk * x_it          # x matmul tile, double-buffered
    rhs  = 2 * tk * tn * w_it          # weight panel, double-buffered
    res  = 2 * tm * tn * x_it          # residual tile (output-aligned)
    bias = 2 * 8 * tn * w_it           # (1, tn) block sublane-pads to (8, tn)
    out  = 2 * tm * tn * o_it          # output tile, double-buffered
    acc  = (tm * tn * 4) if tk < D else 0   # f32 accumulator only if K is tiled
    return lhs + rhs + res + bias + out + acc


def _vmem_capacity_bytes():
    try:
        return int(pltpu.get_tpu_info().vmem_capacity_bytes)
    except Exception:
        pass
    try:
        kind = jax.devices()[0].device_kind.lower()
        if "v7" in kind:
            return 64 * 2**20
        return 128 * 2**20
    except Exception:
        return 64 * 2**20              # conservative: fits every generation


def _select_tiles(B, D, budget, x_dt, w_dt, o_dt):
    x_it = jnp.dtype(x_dt).itemsize
    w_it = jnp.dtype(w_dt).itemsize
    o_it = jnp.dtype(o_dt).itemsize
    m_align = _sublane_align(x_dt)

    # Small batch: single block on the batch axis -> W streamed from HBM once.
    tm = B if B <= 256 else _pick_tile(B, 512, m_align)

    cands = _lane_divisors(D)
    # Prefer tk = D (drops the K axis + accumulator), then the largest tn.
    for tk in cands:
        for tn in cands:
            if _vmem_bytes(tm, tn, tk, D, x_it, w_it, o_it) <= budget:
                return tm, tn, tk

    # Huge D: even the smallest lane tiles blow the budget; shrink tm too.
    tn = tk = cands[-1]
    tm = _pick_tile(B, max(m_align, 128), m_align)
    return tm, tn, tk


# ------------------------------- wrapper -------------------------------------

def res_dense_layer(x, w, b, *, tm=None, tn=None, tk=None):
    """x: [B, D], w: [D, D] (PyTorch (out_features, in_features)), b: [D] -> [B, D]"""
    B, D = x.shape
    assert w.shape == (D, D) and b.shape == (D,)

    # One-time XLA transpose: kernel wants W as (in, out) = (K, N) so the
    # weight tile is lane-dense along N and contraction is (lhs[1] x rhs[0]).
    wt = jnp.asarray(w).T
    b2 = jnp.asarray(b).reshape(1, D)

    capacity = _vmem_capacity_bytes()
    budget = max(32 * 2**20, int(capacity * 0.75))

    a_tm, a_tn, a_tk = _select_tiles(B, D, budget, x.dtype, wt.dtype, x.dtype)
    auto_tn = tn is None
    tm = a_tm if tm is None else tm
    tn = a_tn if tn is None else tn
    tk = a_tk if tk is None else tk

    # Keep >= 2 blocks on a parallel axis for dual-TensorCore chips (v7x);
    # nearly free on single-TC chips (one extra grid step).
    if auto_tn and (B // tm) * (D // tn) == 1 and tn >= 256 and tn % 256 == 0:
        tn //= 2

    assert B % tm == 0 and D % tn == 0 and D % tk == 0

    need = _vmem_bytes(tm, tn, tk, D,
                       jnp.dtype(x.dtype).itemsize,
                       jnp.dtype(wt.dtype).itemsize,
                       jnp.dtype(x.dtype).itemsize)
    vmem_limit = int(min(max(int(need * 1.5), 32 * 2**20), int(capacity * 0.9)))

    if tk == D:
        # No K tiling: single-shot kernel, 2-D (parallel, parallel) grid.
        grid = (B // tm, D // tn)
        return pl.pallas_call(
            _res_dense_kernel_fullk,
            out_shape=jax.ShapeDtypeStruct((B, D), x.dtype),
            grid_spec=pltpu.PrefetchScalarGridSpec(
                num_scalar_prefetch=0,
                grid=grid,
                in_specs=[
                    # matmul LHS tile of x: (tm, D)
                    pl.BlockSpec((tm, D), lambda i, j: (i, 0)),
                    # weight panel (K, N) layout: (D, tn), lane-dense along N
                    pl.BlockSpec((D, tn), lambda i, j: (0, j)),
                    # residual tile of x aligned to the OUTPUT tile
                    pl.BlockSpec((tm, tn), lambda i, j: (i, j)),
                    # bias tile
                    pl.BlockSpec((1, tn), lambda i, j: (0, j)),
                ],
                out_specs=pl.BlockSpec((tm, tn), lambda i, j: (i, j)),
            ),
            compiler_params=pltpu.CompilerParams(
                dimension_semantics=("parallel", "parallel"),
                vmem_limit_bytes=vmem_limit,
            ),
        )(x, wt, x, b2)

    # K tiled: 3-D grid with K last, f32 accumulator scratch.
    grid = (B // tm, D // tn, D // tk)
    return pl.pallas_call(
        _res_dense_kernel_ktiled,
        out_shape=jax.ShapeDtypeStruct((B, D), x.dtype),
        grid_spec=pltpu.PrefetchScalarGridSpec(
            num_scalar_prefetch=0,
            grid=grid,
            in_specs=[
                pl.BlockSpec((tm, tk), lambda i, j, k: (i, k)),
                pl.BlockSpec((tk, tn), lambda i, j, k: (k, j)),
                pl.BlockSpec((tm, tn), lambda i, j, k: (i, j)),
                pl.BlockSpec((1, tn), lambda i, j, k: (0, j)),
            ],
            out_specs=pl.BlockSpec((tm, tn), lambda i, j, k: (i, j)),
            scratch_shapes=[pltpu.VMEM((tm, tn), jnp.float32)],
        ),
        compiler_params=pltpu.CompilerParams(
            dimension_semantics=("parallel", "parallel", "arbitrary"),
            vmem_limit_bytes=vmem_limit,
        ),
    )(x, wt, x, b2)


def _reference(x, w, b):
    return jnp.maximum(x + (x @ w.T + b), 0.0)


if __name__ == "__main__":
    key = jax.random.PRNGKey(0)

    # ---- Test 1: small module-consistent shapes (batch=8, dim=32) ----
    k_x, k_w, k_b, k2 = jax.random.split(key, 4)
    B, D = 8, 32
    x = jax.random.normal(k_x, (B, D), dtype=jnp.float32)
    bound = 1.0 / (D ** 0.5)   # PyTorch nn.Linear default init range
    w = jax.random.uniform(k_w, (D, D), minval=-bound, maxval=bound, dtype=jnp.float32)
    b = jax.random.uniform(k_b, (D,), minval=-bound, maxval=bound, dtype=jnp.float32)

    out = jax.block_until_ready(res_dense_layer(x, w, b))
    ref = _reference(x, w, b)
    assert out.shape == (B, D)
    assert jnp.allclose(out, ref, atol=1e-5, rtol=1e-5), "mismatch vs reference (test 1)"

    # ---- Test 2: force the K-tiled accumulator path (explicit small tiles) ----
    k_x2, k_w2, k_b2, k3 = jax.random.split(k2, 4)
    B2, D2 = 16, 256
    x2 = jax.random.normal(k_x2, (B2, D2), dtype=jnp.float32)
    bound2 = 1.0 / (D2 ** 0.5)
    w2 = jax.random.uniform(k_w2, (D2, D2), minval=-bound2, maxval=bound2, dtype=jnp.float32)
    b2 = jax.random.uniform(k_b2, (D2,), minval=-bound2, maxval=bound2, dtype=jnp.float32)

    out2 = jax.block_until_ready(res_dense_layer(x2, w2, b2, tm=8, tn=128, tk=128))
    ref2 = _reference(x2, w2, b2)
    assert out2.shape == (B2, D2)
    assert jnp.allclose(out2, ref2, atol=1e-4, rtol=1e-4), "mismatch vs reference (test 2)"

    # ---- Test 3: default (auto) tiling on the same shapes: full-K path,
    #      tn split for dual-TC chips ----
    out3 = jax.block_until_ready(res_dense_layer(x2, w2, b2))
    assert out3.shape == (B2, D2)
    assert jnp.allclose(out3, ref2, atol=1e-4, rtol=1e-4), "mismatch vs reference (test 3)"

    print("KERNEL_OK")
</pallas_src>

<mosaic_0001>
module attributes {stable_mosaic.version = 11 : i64} {
  func.func @_res_dense_kernel_fullk(%arg0: i32, %arg1: i32, %arg2: memref<8x32xf32, #tpu.memory_space<vmem>>, %arg3: memref<32x32xf32, #tpu.memory_space<vmem>>, %arg4: memref<8x32xf32, #tpu.memory_space<vmem>>, %arg5: memref<1x32xf32, #tpu.memory_space<vmem>>, %arg6: memref<8x32xf32, #tpu.memory_space<vmem>>) attributes {dimension_semantics = [#tpu.dimension_semantics<parallel>, #tpu.dimension_semantics<parallel>], iteration_bounds = array<i64: 1, 1>, scalar_prefetch = 0 : i64, scratch_operands = 0 : i64, tpu.core_type = #tpu.core_type<tc>, window_params = [{transform_indices = @transform_0, window_bounds = array<i64: 8, 32>}, {transform_indices = @transform_1, window_bounds = array<i64: 32, 32>}, {transform_indices = @transform_2, window_bounds = array<i64: 8, 32>}, {transform_indices = @transform_3, window_bounds = array<i64: 1, 32>}, {transform_indices = @transform_4, window_bounds = array<i64: 8, 32>}]} {
    %c0 = arith.constant 0 : index
    %c0_0 = arith.constant 0 : index
    %0 = vector.load %arg2[%c0, %c0_0] : memref<8x32xf32, #tpu.memory_space<vmem>>, vector<8x32xf32>
    %c0_1 = arith.constant 0 : index
    %c0_2 = arith.constant 0 : index
    %1 = vector.load %arg3[%c0_1, %c0_2] : memref<32x32xf32, #tpu.memory_space<vmem>>, vector<32x32xf32>
    %cst = arith.constant dense<0.000000e+00> : vector<8x32xf32>
    %2 = tpu.matmul %0, %1, %cst {dimension_numbers = #tpu.dot_dimension_numbers<[1], [0], [0], [1], [0, 0, 1, 1], [], []>} : vector<8x32xf32>, vector<32x32xf32>, vector<8x32xf32> -> vector<8x32xf32>
    %c0_3 = arith.constant 0 : index
    %c0_4 = arith.constant 0 : index
    %3 = vector.load %arg4[%c0_3, %c0_4] : memref<8x32xf32, #tpu.memory_space<vmem>>, vector<8x32xf32>
    %4 = arith.addf %2, %3 : vector<8x32xf32>
    %c0_5 = arith.constant 0 : index
    %c0_6 = arith.constant 0 : index
    %5 = vector.load %arg5[%c0_5, %c0_6] : memref<1x32xf32, #tpu.memory_space<vmem>>, vector<1x32xf32>
    %6 = vector.broadcast %5 : vector<1x32xf32> to vector<8x32xf32>
    %7 = arith.addf %4, %6 : vector<8x32xf32>
    %cst_7 = arith.constant 0.000000e+00 : f32
    %8 = vector.broadcast %cst_7 : f32 to vector<8x32xf32>
    %9 = arith.maximumf %7, %8 : vector<8x32xf32>
    %c0_8 = arith.constant 0 : index
    %c0_9 = arith.constant 0 : index
    %10 = vector.load %arg6[%c0_8, %c0_9] : memref<8x32xf32, #tpu.memory_space<vmem>>, vector<8x32xf32>
    tpu.vector_store %arg6[%c0_8, %c0_9], %9 {strides = array<i32>} : memref<8x32xf32, #tpu.memory_space<vmem>>, vector<8x32xf32>,
    return
  }
  func.func @transform_0(%arg0: i32, %arg1: i32) -> (i32, i32) {
    %c0_i32 = arith.constant 0 : i32
    %c0_i32_0 = arith.constant 0 : i32
    return %arg0, %c0_i32 : i32, i32
  }
  func.func @transform_1(%arg0: i32, %arg1: i32) -> (i32, i32) {
    %c0_i32 = arith.constant 0 : i32
    %c0_i32_0 = arith.constant 0 : i32
    return %c0_i32, %arg1 : i32, i32
  }
  func.func @transform_2(%arg0: i32, %arg1: i32) -> (i32, i32) {
    %c0_i32 = arith.constant 0 : i32
    return %arg0, %arg1 : i32, i32
  }
  func.func @transform_3(%arg0: i32, %arg1: i32) -> (i32, i32) {
    %c0_i32 = arith.constant 0 : i32
    %c0_i32_0 = arith.constant 0 : i32
    return %c0_i32, %arg1 : i32, i32
  }
  func.func @transform_4(%arg0: i32, %arg1: i32) -> (i32, i32) {
    %c0_i32 = arith.constant 0 : i32
    return %arg0, %arg1 : i32, i32
  }
}

</mosaic_0001>

<llo_original>
// kernel: tpu_custom_call.1
$region0: #{tpu_custom_call.1}
  #allocation0 [shape = 'u32[]', space=smem, size = 0x4, offset = 0x4, fixed_abs, tag = 'smem constant byte address 0x4 - core index']
  #allocation1 [shape = 'u32[144,128]{1,0:T(1,128)}', space=vmem, size = 0x12000, scoped, tag = 'internal scratch']
  %s0 = inlined_call_operand.hbm [shape: f32[8,32], index: 0, kind: input, shape index: {}]
  %s1 = inlined_call_operand.hbm [shape: f32[32,32], index: 1, kind: input, shape index: {}]
  %s2 = inlined_call_operand.hbm [shape: f32[8,32], index: 2, kind: input, shape index: {}]
  %s3 = inlined_call_operand.vmem [shape: f32[1,32], index: 3, kind: input, shape index: {}]
  %s4 = inlined_call_operand.hbm [shape: f32[8,32], index: 4, kind: output, shape index: {}]
  %s5 = sld [smem:[#allocation0]]
  $region38: #{tpu_custom_call.1} parent=0
    _
  %s7 = ssub.s32 1, %s5
  %s8 = scalar_select 0, %s7, %s5
  $region1: #{tpu_custom_call.1} parent=0
    #allocation2 [shape = 'u8[4096]{0}', space=vmem, size = 0x1000, scoped, tag = 'input window, operand 0, single buffered']
    #allocation3 [shape = 's32[1]{0}', space=sflag, size = 0x4, scoped, tag = 'scoped memory for tpu_custom_call.1']
    #allocation4 [shape = 's32[1]{0}', space=sflag, size = 0x4, scoped, tag = 'scoped memory for tpu_custom_call.1']
    #allocation5 [shape = 'u8[16384]{0}', space=vmem, size = 0x4000, scoped, tag = 'input window, operand 1, single buffered']
    #allocation6 [shape = 's32[1]{0}', space=sflag, size = 0x4, scoped, tag = 'scoped memory for tpu_custom_call.1']
    #allocation7 [shape = 'u8[4096]{0}', space=vmem, size = 0x1000, scoped, tag = 'input window, operand 2, single buffered']
    #allocation8 [shape = 'u8[4096]{0}', space=vmem, size = 0x1000, scoped, tag = 'output window, operand 0, single buffered']
    %9 = vsyncpa [#allocation3], 0
    %10 = vsyncpa [#allocation6], 0
    %11 = vsyncpa [#allocation4], 0
    // Predicated region
    $region2: #{tpu_custom_call.1} parent=1 // pred_check
      _
    $region3: #{tpu_custom_call.1} parent=1 // pred_check_branch
      %13 = sbr.rel (0) target = $region5
    $region4: #{tpu_custom_call.1} parent=1 // pred_region
      %s15 = ssub.s32 128, 128
      %16 = vsyncadd [#allocation3], %s15
      %s18 = sshll.u32 [#allocation2], 4
      %s19 = int_to_ptr.vmem [resolvable:$true] %s18
      %21 = dma.hbm_to_vmem [thread:$0]  %s0, 128, %s19, [#allocation3]
    $region5: #{tpu_custom_call.1} parent=1 // pred_fallthru
      _
    // Predicated region
    $region6: #{tpu_custom_call.1} parent=1 // pred_check
      _
    $region7: #{tpu_custom_call.1} parent=1 // pred_check_branch
      %23 = sbr.rel (0) target = $region9
    $region8: #{tpu_custom_call.1} parent=1 // pred_region
      %s25 = ssub.s32 512, 512
      %26 = vsyncadd [#allocation6], %s25
      %s27 = sshll.u32 [#allocation5], 4
      %s28 = int_to_ptr.vmem [resolvable:$true] %s27
      %33 = dma.hbm_to_vmem [thread:$0]  %s1, 512, %s28, [#allocation6], 128, 128, 8
    $region9: #{tpu_custom_call.1} parent=1 // pred_fallthru
      _
    // Predicated region
    $region10: #{tpu_custom_call.1} parent=1 // pred_check
      _
    $region11: #{tpu_custom_call.1} parent=1 // pred_check_branch
      %35 = sbr.rel (0) target = $region13
    $region12: #{tpu_custom_call.1} parent=1 // pred_region
      %s37 = ssub.s32 128, 128
      %38 = vsyncadd [#allocation6], %s37
      %s40 = sshll.u32 [#allocation7], 4
      %s41 = int_to_ptr.vmem [resolvable:$true] %s40
      %43 = dma.hbm_to_vmem [thread:$0]  %s2, 128, %s41, [#allocation6]
    $region13: #{tpu_custom_call.1} parent=1 // pred_fallthru
      _
    // Predicated region
    $region14: #{tpu_custom_call.1} parent=1 // pred_check
      _
    $region15: #{tpu_custom_call.1} parent=1 // pred_check_branch
      %45 = sbr.rel (0) target = $region17
    $region16: #{tpu_custom_call.1} parent=1 // pred_region
      _
    $region17: #{tpu_custom_call.1} parent=1 // pred_fallthru
      _
    // Predicated region
    $region18: #{tpu_custom_call.1} parent=1 // pred_check
      _
    $region19: #{tpu_custom_call.1} parent=1 // pred_check_branch
      %47 = sbr.rel (0) target = $region21
    $region20: #{tpu_custom_call.1} parent=1 // pred_region
      %48 = dma.done [#allocation3], 128
    $region21: #{tpu_custom_call.1} parent=1 // pred_fallthru
      _
    // Predicated region
    $region22: #{tpu_custom_call.1} parent=1 // pred_check
      _
    $region23: #{tpu_custom_call.1} parent=1 // pred_check_branch
      %50 = sbr.rel (0) target = $region25
    $region24: #{tpu_custom_call.1} parent=1 // pred_region
      %51 = dma.done [#allocation6], 512
    $region25: #{tpu_custom_call.1} parent=1 // pred_fallthru
      _
    // Predicated region
    $region26: #{tpu_custom_call.1} parent=1 // pred_check
      _
    $region27: #{tpu_custom_call.1} parent=1 // pred_check_branch
      %53 = sbr.rel (0) target = $region29
    $region28: #{tpu_custom_call.1} parent=1 // pred_region
      %54 = dma.done [#allocation6], 128
    $region29: #{tpu_custom_call.1} parent=1 // pred_fallthru
      _
    %v55 = vld [vmem:[#allocation2] sm:$0xff]
    %v56 = vld [vmem:[#allocation5] sm:$0xff]
    %v57 = vld [vmem:[#allocation5 + $0x8] sm:$0xff]
    %v58 = vld [vmem:[#allocation5 + $0x10] sm:$0xff]
    %v59 = vld [vmem:[#allocation5 + $0x18] sm:$0xff]
    %v60 = vld [vmem:[#allocation7] sm:$0xff]
    %vm61 = vcmask 261120
    %v63 = vsel %vm61, %v55, 0
    %65 = vmatprep.subr.mxu0 0.0
    %66 = vmatpush1.msra.mxu0 %v56
    %67 = vmatprep.subr.mxu0 0.0
    %68 = vmatpush1.msra.mxu0 %v57
    %69 = vmatprep.subr.mxu0 0.0
    %70 = vmatpush1.msra.mxu0 %v58
    %71 = vmatprep.subr.mxu0 0.0
    %72 = vmatpush1.msra.mxu0 %v59
    %73 = vmatprep.subr.mxu0 0.0
    %74 = vmatpush1.msra.mxu0 0.0
    %75 = vmatprep.subr.mxu0 0.0
    %76 = vmatpush1.msra.mxu0 0.0
    %77 = vmatprep.subr.mxu0 0.0
    %78 = vmatpush1.msra.mxu0 0.0
    %79 = vmatprep.subr.mxu0 0.0
    %80 = vmatpush1.msra.mxu0 0.0
    %81 = vmatprep.subr.mxu0 0.0
    %82 = vmatpush1.msra.mxu0 0.0
    %83 = vmatprep.subr.mxu0 0.0
    %84 = vmatpush1.msra.mxu0 0.0
    %85 = vmatprep.subr.mxu0 0.0
    %86 = vmatpush1.msra.mxu0 0.0
    %87 = vmatprep.subr.mxu0 0.0
    %88 = vmatpush1.msra.mxu0 0.0
    %89 = vmatprep.subr.mxu0 0.0
    %90 = vmatpush1.msra.mxu0 0.0
    %91 = vmatprep.subr.mxu0 0.0
    %92 = vmatpush1.msra.mxu0 0.0
    %93 = vmatprep.subr.mxu0 0.0
    %94 = vmatpush1.msra.mxu0 0.0
    %95 = vmatprep.subr.mxu0 0.0
    %96 = vmatpush1.msra.mxu0 0.0
    %97 = vmatprep.subr.mxu0 0.0
    %98 = vmatpush1.msra.mxu0 0.0
    %99 = vmatprep.subr.mxu0 0.0
    %100 = vmatpush1.msra.mxu0 0.0
    %101 = vmatprep.subr.mxu0 0.0
    %102 = vmatpush1.msra.mxu0 0.0
    %103 = vmatprep.subr.mxu0 0.0
    %104 = vmatpush1.msra.mxu0 0.0
    %105 = vmatprep.subr.mxu0 0.0
    %106 = vmatpush1.msra.mxu0 0.0
    %107 = vmatprep.subr.mxu0 0.0
    %108 = vmatpush1.msra.mxu0 0.0
    %109 = vmatprep.subr.mxu0 0.0
    %110 = vmatpush1.msra.mxu0 0.0
    %111 = vmatprep.subr.mxu0 0.0
    %112 = vmatpush1.msra.mxu0 0.0
    %113 = vmatprep.subr.mxu0 0.0
    %114 = vmatpush1.msra.mxu0 0.0
    %115 = vmatprep.subr.mxu0 0.0
    %116 = vmatpush1.msra.mxu0 0.0
    %117 = vmatprep.subr.mxu0 0.0
    %118 = vmatpush1.msra.mxu0 0.0
    %119 = vmatprep.subr.mxu0 0.0
    %120 = vmatpush1.msra.mxu0 0.0
    %121 = vmatprep.subr.mxu0 0.0
    %122 = vmatpush1.msra.mxu0 0.0
    %123 = vmatprep.subr.mxu0 0.0
    %124 = vmatpush1.msra.mxu0 0.0
    %125 = vmatprep.subr.mxu0 0.0
    %126 = vmatpush1.msra.mxu0 0.0
    %127 = vmatprep.subr.mxu0 0.0
    %128 = vmatpush1.msra.mxu0 0.0
    %129 = vmatprep.mubr.f32.mxu0 0.0
    %130 = vmatmul.mubr.f32.gmra.mrb[0].mxu0 %v63
    %v131 = vpop.f32.mrb[0].mxu0
    %v132 = vadd.f32 %v60, %v131
    %v133 = vpop.f32.mrb[0].mxu0
    %134 = vdwg.mxu0
    %v135 = vld [vmem:[%s3] sm:$0x1]
    %v137 = vlaneseq
    %v138 = vshrl.u32 %v137, 7
    %v139 = vsub.s32 0, %v138
    %v140 = vrot.slane %v135, %v139
    %v142 = vadd.f32 %v132, %v140
    %v143 = vmax.f32 %v142, 0.0
    %144 = vst.msk [vmem:[#allocation8] sm:$0xff] %vm61, %v143
    // Predicated region
    $region30: #{tpu_custom_call.1} parent=1 // pred_check
      _
    $region31: #{tpu_custom_call.1} parent=1 // pred_check_branch
      %146 = sbr.rel (0) target = $region33
    $region32: #{tpu_custom_call.1} parent=1 // pred_region
      %s148 = ssub.s32 128, 128
      %149 = vsyncadd [#allocation4], %s148
      %s151 = sshll.u32 [#allocation8], 4
      %s152 = int_to_ptr.vmem [resolvable:$true] %s151
      %154 = dma.vmem_to_hbm [thread:$0]  %s152, 128, %s4, [#allocation4]
    $region33: #{tpu_custom_call.1} parent=1 // pred_fallthru
      _
    // Predicated region
    $region34: #{tpu_custom_call.1} parent=1 // pred_check
      _
    $region35: #{tpu_custom_call.1} parent=1 // pred_check_branch
      %156 = sbr.rel (0) target = $region37
    $region36: #{tpu_custom_call.1} parent=1 // pred_region
      %157 = dma.done [#allocation4], 128
    $region37: #{tpu_custom_call.1} parent=1 // pred_fallthru
      _
    %158 = vsyncpa [#allocation3], 1
    %159 = vsyncpa [#allocation6], 1
    %160 = vsyncpa [#allocation4], 1

</llo_original>
